<compile_context>
chip_gen: v6e
topology: v6e:2x2x1
jax: 0.10.0
libtpu: 0.0.40
codegen_flags: <defaults>
</compile_context>

<pallas_src>
import functools
import math

import jax
import jax.numpy as jnp
from jax.experimental import pallas as pl
from jax.experimental.pallas import tpu as pltpu


# --------------------------------------------------------------------------
# in-kernel helpers
# --------------------------------------------------------------------------
def _apply_module_mask(h, mk, module_dim, cm):
    """h: (tm, cm*module_dim) f32 hidden; mk: (tm, cm) f32 compact mask.
    Returns the masked hidden activations cast to bf16 for the fc2 MXU."""
    tm = h.shape[0]
    if cm == 1:
        return (h * mk).astype(jnp.bfloat16)
    if module_dim % 128 == 0:
        # Lane-aligned modules: one broadcast multiply, done after the bf16
        # cast (exact because the module mask is {0,1}).
        h3 = h.astype(jnp.bfloat16).reshape(tm, cm, module_dim)
        h3 = h3 * mk.astype(jnp.bfloat16)[:, :, None]
        return h3.reshape(tm, cm * module_dim)
    # Small / unaligned module_dim (e.g. tiny demo shapes): static lane
    # slices, f32 multiply, then a single cast.
    parts = [h[:, m * module_dim:(m + 1) * module_dim] * mk[:, m:m + 1]
             for m in range(cm)]
    return jnp.concatenate(parts, axis=1).astype(jnp.bfloat16)


def _ffn_kernel_resident(x_ref, w1_ref, b1_ref, mask_ref, w2_ref, b2_ref,
                         out_ref, *, module_dim, modules_per_chunk):
    """Single-axis grid: full weights resident in VMEM, no hidden chunking."""
    x = x_ref[...].astype(jnp.bfloat16)
    h = jnp.dot(x, w1_ref[...], preferred_element_type=jnp.float32)
    h = jnp.maximum(h + b1_ref[...], 0.0)                 # fc1 bias + relu
    # TODO(synk): activation_dropout / dropout are identity in eval mode and
    # ffn_layernorm is None in this configuration.
    hb = _apply_module_mask(h, mask_ref[...], module_dim, modules_per_chunk)
    y = jnp.dot(hb, w2_ref[...], preferred_element_type=jnp.float32)
    out_ref[...] = (y + b2_ref[...]).astype(out_ref.dtype)


def _ffn_kernel_chunked(x_ref, w1_ref, b1_ref, mask_ref, w2_ref, b2_ref,
                        out_ref, *, module_dim, modules_per_chunk):
    """2-axis grid (rows, hidden-chunks): accumulate fc2 partials directly
    into the resident f32 out block (no separate accumulator scratch)."""
    k = pl.program_id(1)

    @pl.when(k == 0)
    def _():
        out_ref[...] = jnp.zeros_like(out_ref)

    x = x_ref[...].astype(jnp.bfloat16)
    h = jnp.dot(x, w1_ref[...], preferred_element_type=jnp.float32)
    h = jnp.maximum(h + b1_ref[...], 0.0)
    hb = _apply_module_mask(h, mask_ref[...], module_dim, modules_per_chunk)
    out_ref[...] += jnp.dot(hb, w2_ref[...], preferred_element_type=jnp.float32)

    @pl.when(k == pl.num_programs(1) - 1)
    def _():
        out_ref[...] += b2_ref[...]


# --------------------------------------------------------------------------
# host-side helpers
# --------------------------------------------------------------------------
def _round_up(x, m):
    return (x + m - 1) // m * m


def _pick_tk(ffn_dim, module_dim, tk_max):
    """Largest hidden chunk <= tk_max that divides ffn_dim, spans whole
    modules and keeps the chunk lane width a multiple of 128 (else ffn_dim)."""
    if ffn_dim <= tk_max:
        return ffn_dim
    step = module_dim * 128 // math.gcd(module_dim, 128)   # lcm(module_dim, 128)
    best = None
    c = step
    while c <= tk_max:
        if ffn_dim % c == 0:
            best = c
        c += step
    return best if best is not None else ffn_dim


def _vmem_capacity_bytes():
    try:
        return int(pltpu.get_tpu_info().vmem_capacity_bytes)
    except Exception:
        return 64 << 20          # conservative (v7x per-TC) fallback


def _estimate_vmem(tm, tk, E):
    """Rough double-buffered working-set estimate (with lane/sublane padding
    and Mosaic internal-scratch headroom)."""
    Ep = max(E, 128)
    Kp = max(tk, 128)
    return (2 * tm * Ep * 4            # x tiles (f32)
            + 2 * Ep * Kp * 2          # W1^T block(s) (bf16)
            + 2 * Kp * Ep * 2          # W2^T block(s) (bf16)
            + 2 * 8 * Kp * 4           # b1 block(s)
            + 2 * 8 * Ep * 4           # b2
            + 2 * tm * 128 * 4         # compact mask tiles (lane padded)
            + 2 * tm * Ep * 4          # out tiles (f32)
            + (4 << 20))               # headroom


def prepare_params(w1, b1, w2, b2):
    """One-time parameter prep, OUTSIDE the per-step hot path.
    PyTorch nn.Linear layout (out, in) -> kernel layout, bf16 for the MXU."""
    w1_t = jnp.asarray(w1).T.astype(jnp.bfloat16)             # (E, F)
    w2_t = jnp.asarray(w2).T.astype(jnp.bfloat16)             # (F, E)
    b1_2d = jnp.asarray(b1).reshape(1, -1).astype(jnp.float32)
    b2_2d = jnp.asarray(b2).reshape(1, -1).astype(jnp.float32)
    return w1_t, b1_2d, w2_t, b2_2d


# --------------------------------------------------------------------------
# forward
# --------------------------------------------------------------------------
@functools.partial(jax.jit, static_argnames=("num_modules", "tm", "tk"))
def masked_ffn_forward(x, module_mask, w1_t, b1_2d, w2_t, b2_2d, *,
                       num_modules, tm=512, tk=None):
    """
    x:           (seq_len, bsz, embed_dim)       float32
    module_mask: (bsz, seq_len, num_modules)
    w1_t: (embed_dim, ffn_dim) bf16, b1_2d: (1, ffn_dim) f32  (prepare_params)
    w2_t: (ffn_dim, embed_dim) bf16, b2_2d: (1, embed_dim) f32
    returns (x_out, fc_result), both (seq_len, bsz, embed_dim), dtype of x.
    """
    seq_len, bsz, embed_dim = x.shape
    ffn_dim = w1_t.shape[1]
    assert ffn_dim % num_modules == 0, "ffn_embed_dim must divide num_modules"
    module_dim = ffn_dim // num_modules
    T = seq_len * bsz

    # --- per-generation VMEM budget & tile selection -------------------------
    cap = _vmem_capacity_bytes()
    budget = int(0.72 * cap)            # planning budget (compile margin)
    vmem_limit = int(0.90 * cap)        # scoped-vmem limit handed to Mosaic

    tm_eff = min(tm, _round_up(T, 16))
    # keep >= 2 row blocks so v7x's two TensorCores both get work
    if T >= 512 and _round_up(T, tm_eff) // tm_eff < 2:
        tm_eff = _round_up((T + 1) // 2, 16)
    while tm_eff > 16 and _estimate_vmem(tm_eff, min(ffn_dim, 512), embed_dim) > budget:
        tm_eff = max(16, tm_eff // 2)

    if _estimate_vmem(tm_eff, ffn_dim, embed_dim) <= budget:
        tk_eff = ffn_dim                # full bf16 weights stay resident
    else:
        tk_eff = _pick_tk(ffn_dim, module_dim, tk if tk is not None else 1024)
        while (_estimate_vmem(tm_eff, tk_eff, embed_dim) > budget
               and tk_eff > module_dim):
            smaller = _pick_tk(ffn_dim, module_dim, tk_eff // 2)
            if smaller >= tk_eff:
                break
            tk_eff = smaller

    num_chunks = ffn_dim // tk_eff
    cm = tk_eff // module_dim           # modules per hidden chunk
    Tp = _round_up(T, tm_eff)
    rows = Tp // tm_eff

    # --- glue (plain JAX, all small): flatten/pad x, compact mask ------------
    x2d = x.reshape(T, embed_dim)
    mask_t = jnp.transpose(module_mask, (1, 0, 2)).reshape(T, num_modules)
    mask_t = mask_t.astype(jnp.float32)
    if Tp != T:
        x2d = jnp.pad(x2d, ((0, Tp - T), (0, 0)))
        mask_t = jnp.pad(mask_t, ((0, Tp - T), (0, 0)))
    # (num_chunks, Tp, modules_per_chunk) compact mask slabs.
    mask_c = jnp.transpose(mask_t.reshape(Tp, num_chunks, cm), (1, 0, 2))

    if num_chunks == 1:
        kernel = functools.partial(_ffn_kernel_resident,
                                   module_dim=module_dim, modules_per_chunk=cm)
        grid = (rows,)
        in_specs = [
            pl.BlockSpec((tm_eff, embed_dim), lambda i: (i, 0)),       # x
            pl.BlockSpec((embed_dim, tk_eff), lambda i: (0, 0)),       # W1^T (resident)
            pl.BlockSpec((1, tk_eff), lambda i: (0, 0)),               # b1
            pl.BlockSpec((None, tm_eff, cm), lambda i: (0, i, 0)),     # mask
            pl.BlockSpec((tk_eff, embed_dim), lambda i: (0, 0)),       # W2^T (resident)
            pl.BlockSpec((1, embed_dim), lambda i: (0, 0)),            # b2
        ]
        out_spec = pl.BlockSpec((tm_eff, embed_dim), lambda i: (i, 0))
        dims = ("parallel",)
    else:
        kernel = functools.partial(_ffn_kernel_chunked,
                                   module_dim=module_dim, modules_per_chunk=cm)
        grid = (rows, num_chunks)
        in_specs = [
            pl.BlockSpec((tm_eff, embed_dim), lambda i, k: (i, 0)),    # x
            pl.BlockSpec((embed_dim, tk_eff), lambda i, k: (0, k)),    # W1^T chunk
            pl.BlockSpec((1, tk_eff), lambda i, k: (0, k)),            # b1 chunk
            pl.BlockSpec((None, tm_eff, cm), lambda i, k: (k, i, 0)),  # mask chunk
            pl.BlockSpec((tk_eff, embed_dim), lambda i, k: (k, 0)),    # W2^T chunk
            pl.BlockSpec((1, embed_dim), lambda i, k: (0, 0)),         # b2
        ]
        out_spec = pl.BlockSpec((tm_eff, embed_dim), lambda i, k: (i, 0))
        dims = ("parallel", "arbitrary")

    out2d = pl.pallas_call(
        kernel,
        out_shape=jax.ShapeDtypeStruct((Tp, embed_dim), jnp.float32),
        grid_spec=pltpu.PrefetchScalarGridSpec(
            num_scalar_prefetch=0,
            grid=grid,
            in_specs=in_specs,
            out_specs=out_spec,
        ),
        compiler_params=pltpu.CompilerParams(
            dimension_semantics=dims,
            vmem_limit_bytes=vmem_limit),
    )(x2d, w1_t, b1_2d, mask_c, w2_t, b2_2d)

    out = out2d[:T].reshape(seq_len, bsz, embed_dim).astype(x.dtype)
    # TODO(synk): dropout_module is identity in eval mode, so fc_result
    # aliases the output exactly as in the PyTorch module.
    fc_result = out
    return out, fc_result


# --------------------------------------------------------------------------
# pure-JAX reference (mirrors the kernel's bf16-MXU-input numerics)
# --------------------------------------------------------------------------
def _reference(x, module_mask, w1, b1, w2, b2, num_modules):
    seq_len, bsz, embed_dim = x.shape
    ffn_dim = w1.shape[0]
    module_dim = ffn_dim // num_modules
    xb = x.astype(jnp.bfloat16)
    w1b = w1.astype(jnp.bfloat16)
    w2b = w2.astype(jnp.bfloat16)
    h = jnp.einsum("sbe,fe->sbf", xb, w1b,
                   preferred_element_type=jnp.float32) + b1
    h = jnp.maximum(h, 0.0)
    h = h.reshape(seq_len, bsz, num_modules, module_dim)
    m = jnp.transpose(module_mask, (1, 0, 2))[..., None]
    h = (h * m).reshape(seq_len, bsz, ffn_dim).astype(jnp.bfloat16)
    y = jnp.einsum("sbf,ef->sbe", h, w2b,
                   preferred_element_type=jnp.float32) + b2
    return y.astype(x.dtype)


if __name__ == "__main__":
    seq_len, bsz = 8, 2
    embed_dim, ffn_embed_dim, num_modules = 32, 64, 4

    key = jax.random.PRNGKey(0)
    kx, km, k1, k2, k3, k4 = jax.random.split(key, 6)

    x = jax.random.normal(kx, (seq_len, bsz, embed_dim), dtype=jnp.float32)
    # binary module mask, shape (bsz, seq_len, num_modules)
    module_mask = (jax.random.uniform(km, (bsz, seq_len, num_modules)) > 0.3
                   ).astype(jnp.float32)

    # Deterministic parameters (PyTorch nn.Linear shapes: (out, in)).
    w1 = jax.random.normal(k1, (ffn_embed_dim, embed_dim), jnp.float32) * 0.1
    b1 = jax.random.normal(k2, (ffn_embed_dim,), jnp.float32) * 0.1
    w2 = jax.random.normal(k3, (embed_dim, ffn_embed_dim), jnp.float32) * 0.1
    b2 = jax.random.normal(k4, (embed_dim,), jnp.float32) * 0.1

    # One-time param prep (transpose + bf16 cast) outside the hot path.
    params = prepare_params(w1, b1, w2, b2)

    out, fc_result = masked_ffn_forward(x, module_mask, *params,
                                        num_modules=num_modules)
    jax.block_until_ready(out)

    ref = _reference(x, module_mask, w1, b1, w2, b2, num_modules)
    assert jnp.allclose(out, ref, atol=2e-3, rtol=2e-3), "mismatch vs reference"
    assert jnp.allclose(fc_result, out), "fc_result mismatch"

    print("KERNEL_OK")
</pallas_src>

<mosaic_0001>
module attributes {stable_mosaic.version = 11 : i64} {
  func.func @_ffn_kernel_resident(%arg0: i32, %arg1: memref<16x32xf32, #tpu.memory_space<vmem>>, %arg2: memref<32x64xbf16, #tpu.memory_space<vmem>>, %arg3: memref<1x64xf32, #tpu.memory_space<vmem>>, %arg4: memref<1x16x4xf32, #tpu.memory_space<vmem>>, %arg5: memref<64x32xbf16, #tpu.memory_space<vmem>>, %arg6: memref<1x32xf32, #tpu.memory_space<vmem>>, %arg7: memref<16x32xf32, #tpu.memory_space<vmem>>) attributes {dimension_semantics = [#tpu.dimension_semantics<parallel>], iteration_bounds = array<i64: 1>, scalar_prefetch = 0 : i64, scratch_operands = 0 : i64, tpu.core_type = #tpu.core_type<tc>, window_params = [{transform_indices = @transform_0, window_bounds = array<i64: 16, 32>}, {pipeline_mode = #tpu.pipeline_mode<synchronous>, transform_indices = @transform_1, window_bounds = array<i64: 32, 64>}, {pipeline_mode = #tpu.pipeline_mode<synchronous>, transform_indices = @transform_2, window_bounds = array<i64: 1, 64>}, {transform_indices = @transform_3, window_bounds = array<i64: 1, 16, 4>}, {pipeline_mode = #tpu.pipeline_mode<synchronous>, transform_indices = @transform_4, window_bounds = array<i64: 64, 32>}, {pipeline_mode = #tpu.pipeline_mode<synchronous>, transform_indices = @transform_5, window_bounds = array<i64: 1, 32>}, {transform_indices = @transform_6, window_bounds = array<i64: 16, 32>}]} {
    %c0 = arith.constant 0 : index
    %c0_0 = arith.constant 0 : index
    %0 = vector.load %arg1[%c0, %c0_0] : memref<16x32xf32, #tpu.memory_space<vmem>>, vector<16x32xf32>
    %1 = arith.truncf %0 : vector<16x32xf32> to vector<16x32xbf16>
    %c0_1 = arith.constant 0 : index
    %c0_2 = arith.constant 0 : index
    %2 = vector.load %arg2[%c0_1, %c0_2] : memref<32x64xbf16, #tpu.memory_space<vmem>>, vector<32x64xbf16>
    %cst = arith.constant dense<0.000000e+00> : vector<16x64xf32>
    %3 = tpu.matmul %1, %2, %cst {dimension_numbers = #tpu.dot_dimension_numbers<[1], [0], [0], [1], [0, 0, 1, 1], [], []>} : vector<16x32xbf16>, vector<32x64xbf16>, vector<16x64xf32> -> vector<16x64xf32>
    %c0_3 = arith.constant 0 : index
    %c0_4 = arith.constant 0 : index
    %4 = vector.load %arg3[%c0_3, %c0_4] : memref<1x64xf32, #tpu.memory_space<vmem>>, vector<1x64xf32>
    %5 = vector.broadcast %4 : vector<1x64xf32> to vector<16x64xf32>
    %6 = arith.addf %3, %5 : vector<16x64xf32>
    %cst_5 = arith.constant 0.000000e+00 : f32
    %7 = vector.broadcast %cst_5 : f32 to vector<16x64xf32>
    %8 = arith.maximumf %6, %7 : vector<16x64xf32>
    %c0_6 = arith.constant 0 : index
    %c0_7 = arith.constant 0 : index
    %c0_8 = arith.constant 0 : index
    %9 = vector.load %arg4[%c0_6, %c0_7, %c0_8] : memref<1x16x4xf32, #tpu.memory_space<vmem>>, vector<1x16x4xf32>
    %10 = vector.shape_cast %9 : vector<1x16x4xf32> to vector<16x4xf32>
    %11 = vector.extract_strided_slice %8 {offsets = [0, 0], sizes = [16, 16], strides = [1, 1]} : vector<16x64xf32> to vector<16x16xf32>
    %12 = vector.extract_strided_slice %10 {offsets = [0, 0], sizes = [16, 1], strides = [1, 1]} : vector<16x4xf32> to vector<16x1xf32>
    %13 = vector.broadcast %12 : vector<16x1xf32> to vector<16x16xf32>
    %14 = arith.mulf %11, %13 : vector<16x16xf32>
    %15 = vector.extract_strided_slice %8 {offsets = [0, 16], sizes = [16, 16], strides = [1, 1]} : vector<16x64xf32> to vector<16x16xf32>
    %16 = vector.extract_strided_slice %10 {offsets = [0, 1], sizes = [16, 1], strides = [1, 1]} : vector<16x4xf32> to vector<16x1xf32>
    %17 = vector.broadcast %16 : vector<16x1xf32> to vector<16x16xf32>
    %18 = arith.mulf %15, %17 : vector<16x16xf32>
    %19 = vector.extract_strided_slice %8 {offsets = [0, 32], sizes = [16, 16], strides = [1, 1]} : vector<16x64xf32> to vector<16x16xf32>
    %20 = vector.extract_strided_slice %10 {offsets = [0, 2], sizes = [16, 1], strides = [1, 1]} : vector<16x4xf32> to vector<16x1xf32>
    %21 = vector.broadcast %20 : vector<16x1xf32> to vector<16x16xf32>
    %22 = arith.mulf %19, %21 : vector<16x16xf32>
    %23 = vector.extract_strided_slice %8 {offsets = [0, 48], sizes = [16, 16], strides = [1, 1]} : vector<16x64xf32> to vector<16x16xf32>
    %24 = vector.extract_strided_slice %10 {offsets = [0, 3], sizes = [16, 1], strides = [1, 1]} : vector<16x4xf32> to vector<16x1xf32>
    %25 = vector.broadcast %24 : vector<16x1xf32> to vector<16x16xf32>
    %26 = arith.mulf %23, %25 : vector<16x16xf32>
    %27 = tpu.concatenate %14, %18, %22, %26 in 1 : vector<16x16xf32>, vector<16x16xf32>, vector<16x16xf32>, vector<16x16xf32> -> vector<16x64xf32>
    %28 = arith.truncf %27 : vector<16x64xf32> to vector<16x64xbf16>
    %c0_9 = arith.constant 0 : index
    %c0_10 = arith.constant 0 : index
    %29 = vector.load %arg5[%c0_9, %c0_10] : memref<64x32xbf16, #tpu.memory_space<vmem>>, vector<64x32xbf16>
    %cst_11 = arith.constant dense<0.000000e+00> : vector<16x32xf32>
    %30 = tpu.matmul %28, %29, %cst_11 {dimension_numbers = #tpu.dot_dimension_numbers<[1], [0], [0], [1], [0, 0, 1, 1], [], []>} : vector<16x64xbf16>, vector<64x32xbf16>, vector<16x32xf32> -> vector<16x32xf32>
    %c0_12 = arith.constant 0 : index
    %c0_13 = arith.constant 0 : index
    %31 = vector.load %arg6[%c0_12, %c0_13] : memref<1x32xf32, #tpu.memory_space<vmem>>, vector<1x32xf32>
    %32 = vector.broadcast %31 : vector<1x32xf32> to vector<16x32xf32>
    %33 = arith.addf %30, %32 : vector<16x32xf32>
    %c0_14 = arith.constant 0 : index
    %c0_15 = arith.constant 0 : index
    %34 = vector.load %arg7[%c0_14, %c0_15] : memref<16x32xf32, #tpu.memory_space<vmem>>, vector<16x32xf32>
    tpu.vector_store %arg7[%c0_14, %c0_15], %33 {strides = array<i32>} : memref<16x32xf32, #tpu.memory_space<vmem>>, vector<16x32xf32>,
    return
  }
  func.func @transform_0(%arg0: i32) -> (i32, i32) {
    %c0_i32 = arith.constant 0 : i32
    %c0_i32_0 = arith.constant 0 : i32
    return %arg0, %c0_i32 : i32, i32
  }
  func.func @transform_1(%arg0: i32) -> (i32, i32) {
    %c0_i32 = arith.constant 0 : i32
    %c0_i32_0 = arith.constant 0 : i32
    %c0_i32_1 = arith.constant 0 : i32
    return %c0_i32, %c0_i32_0 : i32, i32
  }
  func.func @transform_2(%arg0: i32) -> (i32, i32) {
    %c0_i32 = arith.constant 0 : i32
    %c0_i32_0 = arith.constant 0 : i32
    %c0_i32_1 = arith.constant 0 : i32
    return %c0_i32, %c0_i32_0 : i32, i32
  }
  func.func @transform_3(%arg0: i32) -> (i32, i32, i32) {
    %c0_i32 = arith.constant 0 : i32
    %c0_i32_0 = arith.constant 0 : i32
    %c0_i32_1 = arith.constant 0 : i32
    return %c0_i32, %arg0, %c0_i32_0 : i32, i32, i32
  }
  func.func @transform_4(%arg0: i32) -> (i32, i32) {
    %c0_i32 = arith.constant 0 : i32
    %c0_i32_0 = arith.constant 0 : i32
    %c0_i32_1 = arith.constant 0 : i32
    return %c0_i32, %c0_i32_0 : i32, i32
  }
  func.func @transform_5(%arg0: i32) -> (i32, i32) {
    %c0_i32 = arith.constant 0 : i32
    %c0_i32_0 = arith.constant 0 : i32
    %c0_i32_1 = arith.constant 0 : i32
    return %c0_i32, %c0_i32_0 : i32, i32
  }
  func.func @transform_6(%arg0: i32) -> (i32, i32) {
    %c0_i32 = arith.constant 0 : i32
    %c0_i32_0 = arith.constant 0 : i32
    return %arg0, %c0_i32 : i32, i32
  }
}

</mosaic_0001>

<llo_original>
// kernel: masked_ffn_forward.1
$region0: #{masked_ffn_forward.1}
  #allocation0 [shape = 'u32[]', space=smem, size = 0x4, offset = 0x4, fixed_abs, tag = 'smem constant byte address 0x4 - core index']
  #allocation1 [shape = 'u32[144,128]{1,0:T(1,128)}', space=vmem, size = 0x12000, scoped, tag = 'internal scratch']
  %s0 = inlined_call_operand.vmem [shape: f32[16,32], index: 0, kind: input, shape index: {}]
  %s1 = inlined_call_operand.vmem [shape: bf16[32,64], index: 1, kind: input, shape index: {}]
  %s2 = inlined_call_operand.vmem [shape: f32[1,64], index: 2, kind: input, shape index: {}]
  %s3 = inlined_call_operand.vmem [shape: f32[1,16,4], index: 3, kind: input, shape index: {}]
  %s4 = inlined_call_operand.vmem [shape: bf16[64,32], index: 4, kind: input, shape index: {}]
  %s5 = inlined_call_operand.vmem [shape: f32[1,32], index: 5, kind: input, shape index: {}]
  %s6 = inlined_call_operand.vmem [shape: f32[16,32], index: 6, kind: output, shape index: {}]
  %s7 = sld [smem:[#allocation0]]
  $region34: #{masked_ffn_forward.1} parent=0
    _
  %s9 = ssub.s32 1, %s7
  %s10 = scalar_select 0, %s9, %s7
  // Predicated region
  $region2: #{masked_ffn_forward.1} parent=0 // pred_check
    _
  $region3: #{masked_ffn_forward.1} parent=0 // pred_check_branch
    %12 = sbr.rel (0) target = $region5
  $region4: #{masked_ffn_forward.1} parent=0 // pred_region
    _
  $region5: #{masked_ffn_forward.1} parent=0 // pred_fallthru
    _
  // Predicated region
  $region6: #{masked_ffn_forward.1} parent=0 // pred_check
    _
  $region7: #{masked_ffn_forward.1} parent=0 // pred_check_branch
    %14 = sbr.rel (0) target = $region9
  $region8: #{masked_ffn_forward.1} parent=0 // pred_region
    _
  $region9: #{masked_ffn_forward.1} parent=0 // pred_fallthru
    _
  // Predicated region
  $region10: #{masked_ffn_forward.1} parent=0 // pred_check
    _
  $region11: #{masked_ffn_forward.1} parent=0 // pred_check_branch
    %16 = sbr.rel (0) target = $region13
  $region12: #{masked_ffn_forward.1} parent=0 // pred_region
    _
  $region13: #{masked_ffn_forward.1} parent=0 // pred_fallthru
    _
  // Predicated region
  $region14: #{masked_ffn_forward.1} parent=0 // pred_check
    _
  $region15: #{masked_ffn_forward.1} parent=0 // pred_check_branch
    %18 = sbr.rel (0) target = $region17
  $region16: #{masked_ffn_forward.1} parent=0 // pred_region
    _
  $region17: #{masked_ffn_forward.1} parent=0 // pred_fallthru
    _
  // Predicated region
  $region18: #{masked_ffn_forward.1} parent=0 // pred_check
    _
  $region19: #{masked_ffn_forward.1} parent=0 // pred_check_branch
    %20 = sbr.rel (0) target = $region21
  $region20: #{masked_ffn_forward.1} parent=0 // pred_region
    _
  $region21: #{masked_ffn_forward.1} parent=0 // pred_fallthru
    _
  // Predicated region
  $region22: #{masked_ffn_forward.1} parent=0 // pred_check
    _
  $region23: #{masked_ffn_forward.1} parent=0 // pred_check_branch
    %22 = sbr.rel (0) target = $region25
  $region24: #{masked_ffn_forward.1} parent=0 // pred_region
    _
  $region25: #{masked_ffn_forward.1} parent=0 // pred_fallthru
    _
  %v24 = vld [vmem:[%s0] sm:$0xff]
  %v25 = vld [vmem:[%s0 + $0x8] sm:$0xff]
  %v26 = vpack.c.bf16 %v25, %v24
  %v27 = vld [vmem:[%s1] sm:$0xf]
  %v28 = vld [vmem:[%s1 + $0x4] sm:$0xf]
  %v29 = vld [vmem:[%s1 + $0x8] sm:$0xf]
  %v30 = vld [vmem:[%s1 + $0xc] sm:$0xf]
  %v31 = vld [vmem:[%s2] sm:$0x1]
  %v33 = vlaneseq
  %v34 = vshrl.u32 %v33, 7
  %v35 = vsub.s32 0, %v34
  %v36 = vrot.slane %v31, %v35
  %v42 = vunpack.c.l.b16 %v27
  %v43 = vunpack.c.l.b16 %v28
  %v44 = vunpack.c.l.b16 %v29
  %v45 = vunpack.c.l.b16 %v30
  %v46 = vpack.c.b16 %v43, %v42
  %v47 = vpack.c.b16 %v45, %v44
  %vm50 = vcmask 261120
  %v52 = vsel %vm50, %v26, 0
  %54 = vmatprep.subr.bf16.mxu0 0
  %55 = vmatpush1.bf16.msra.mxu0 0
  %56 = vmatprep.subr.bf16.mxu0 0
  %57 = vmatpush1.bf16.msra.mxu0 0
  %58 = vmatprep.subr.bf16.mxu0 0
  %59 = vmatpush1.bf16.msra.mxu0 0
  %60 = vmatprep.subr.bf16.mxu0 0
  %61 = vmatpush1.bf16.msra.mxu0 0
  %62 = vmatprep.subr.bf16.mxu0 0
  %63 = vmatpush1.bf16.msra.mxu0 0
  %64 = vmatprep.subr.bf16.mxu0 0
  %65 = vmatpush1.bf16.msra.mxu0 0
  %66 = vmatprep.subr.bf16.mxu0 0
  %67 = vmatpush1.bf16.msra.mxu0 %v47
  %68 = vmatprep.subr.bf16.mxu0 0
  %69 = vmatpush1.bf16.msra.mxu0 %v46
  %70 = vmatprep.subr.bf16.mxu0 0
  %71 = vmatpush2.bf16.msra.mxu0 0
  %72 = vmatprep.subr.bf16.mxu0 0
  %73 = vmatpush2.bf16.msra.mxu0 0
  %74 = vmatprep.subr.bf16.mxu0 0
  %75 = vmatpush2.bf16.msra.mxu0 0
  %76 = vmatprep.subr.bf16.mxu0 0
  %77 = vmatpush2.bf16.msra.mxu0 0
  %78 = vmatprep.subr.bf16.mxu0 0
  %79 = vmatpush2.bf16.msra.mxu0 0
  %80 = vmatprep.subr.bf16.mxu0 0
  %81 = vmatpush2.bf16.msra.mxu0 0
  %82 = vmatprep.subr.bf16.mxu0 0
  %83 = vmatpush2.bf16.msra.mxu0 0
  %84 = vmatprep.subr.bf16.mxu0 0
  %85 = vmatpush2.bf16.msra.mxu0 0
  %86 = vmatprep.mubr.bf16.mxu0 0
  %87 = vmatmul.mubr.bf16.gmra.mxu0 %v52
  %v88 = vpop.f32.mrf.mxu0
  %v89 = vadd.f32 %v36, %v88
  %v90 = vpop.f32.mrf.mxu0
  %v91 = vpop.f32.mrf.mxu0
  %v92 = vadd.f32 %v36, %v91
  %v93 = vpop.f32.mrf.mxu0
  %94 = vdwg.mxu0
  %v95 = vmax.f32 %v89, 0.0
  %v96 = vmax.f32 %v92, 0.0
  %v97 = vld [vmem:[%s3] sm:$0xff]
  %v98 = vld [vmem:[%s3 + $0x8] sm:$0xff]
  %100 = vset.pattern.permute.xlu0 0
  %101 = vperm.xlu0 %100, %v97
  %v102 = vpop.permute.xlu0 %101
  %105 = vset.pattern.permute.xlu0 0
  %106 = vperm.xlu0 %105, %v98
  %v107 = vpop.permute.xlu0 %106
  %v109 = vmul.f32 %v95, %v102
  %v110 = vmul.f32 %v96, %v107
  %111 = vset.pattern.permute.xlu0 1
  %112 = vperm.xlu0 %111, %v97
  %v113 = vpop.permute.xlu0 %112
  %115 = vset.pattern.permute.xlu0 1
  %116 = vperm.xlu0 %115, %v98
  %v117 = vpop.permute.xlu0 %116
  %v119 = vmul.f32 %v95, %v113
  %v120 = vmul.f32 %v96, %v117
  %121 = vset.pattern.permute.xlu0 2
  %122 = vperm.xlu0 %121, %v97
  %v123 = vpop.permute.xlu0 %122
  %125 = vset.pattern.permute.xlu0 2
  %126 = vperm.xlu0 %125, %v98
  %v127 = vpop.permute.xlu0 %126
  %v129 = vmul.f32 %v95, %v123
  %v130 = vmul.f32 %v96, %v127
  %131 = vset.pattern.permute.xlu0 3
  %132 = vperm.xlu0 %131, %v97
  %v133 = vpop.permute.xlu0 %132
  %135 = vset.pattern.permute.xlu0 3
  %136 = vperm.xlu0 %135, %v98
  %v137 = vpop.permute.xlu0 %136
  %v139 = vmul.f32 %v95, %v133
  %v140 = vmul.f32 %v96, %v137
  %vm141 = vcmask 130048
  %v142 = vsel %vm141, %v109, %v119
  %v143 = vsel %vm141, %v110, %v120
  %v144 = vsel %vm50, %v142, %v129
  %v145 = vsel %vm50, %v143, %v130
  %vm146 = vcmask 392192
  %v147 = vsel %vm146, %v144, %v139
  %v148 = vsel %vm146, %v145, %v140
  %v149 = vpack.c.bf16 %v148, %v147
  %v150 = vld [vmem:[%s4] sm:$0xf]
  %v151 = vld [vmem:[%s4 + $0x4] sm:$0xf]
  %v152 = vld [vmem:[%s4 + $0x8] sm:$0xf]
  %v153 = vld [vmem:[%s4 + $0xc] sm:$0xf]
  %v154 = vld [vmem:[%s4 + $0x10] sm:$0xf]
  %v155 = vld [vmem:[%s4 + $0x14] sm:$0xf]
  %v156 = vld [vmem:[%s4 + $0x18] sm:$0xf]
  %v157 = vld [vmem:[%s4 + $0x1c] sm:$0xf]
  %v158 = vld [vmem:[%s5] sm:$0x1]
  %v160 = vlaneseq
  %v161 = vshrl.u32 %v160, 7
  %v162 = vsub.s32 0, %v161
  %v163 = vrot.slane %v158, %v162
  %v173 = vunpack.c.l.b16 %v150
  %v174 = vunpack.c.l.b16 %v151
  %v175 = vunpack.c.l.b16 %v152
  %v176 = vunpack.c.l.b16 %v153
  %v177 = vunpack.c.l.b16 %v154
  %v178 = vunpack.c.l.b16 %v155
  %v179 = vunpack.c.l.b16 %v156
  %v180 = vunpack.c.l.b16 %v157
  %v181 = vpack.c.b16 %v174, %v173
  %v182 = vpack.c.b16 %v176, %v175
  %v183 = vpack.c.b16 %v178, %v177
  %v184 = vpack.c.b16 %v180, %v179
  %vm189 = vcmask 523264
  %v191 = vsel %vm189, %v149, 0
  %193 = vmatprep.subr.bf16.mxu0 0
  %194 = vmatpush1.bf16.msra.mxu0 0
  %195 = vmatprep.subr.bf16.mxu0 0
  %196 = vmatpush1.bf16.msra.mxu0 0
  %197 = vmatprep.subr.bf16.mxu0 0
  %198 = vmatpush1.bf16.msra.mxu0 0
  %199 = vmatprep.subr.bf16.mxu0 0
  %200 = vmatpush1.bf16.msra.mxu0 0
  %201 = vmatprep.subr.bf16.mxu0 0
  %202 = vmatpush1.bf16.msra.mxu0 %v184
  %203 = vmatprep.subr.bf16.mxu0 0
  %204 = vmatpush1.bf16.msra.mxu0 %v183
  %205 = vmatprep.subr.bf16.mxu0 0
  %206 = vmatpush1.bf16.msra.mxu0 %v182
  %207 = vmatprep.subr.bf16.mxu0 0
  %208 = vmatpush1.bf16.msra.mxu0 %v181
  %209 = vmatprep.subr.bf16.mxu0 0
  %210 = vmatpush2.bf16.msra.mxu0 0
  %211 = vmatprep.subr.bf16.mxu0 0
  %212 = vmatpush2.bf16.msra.mxu0 0
  %213 = vmatprep.subr.bf16.mxu0 0
  %214 = vmatpush2.bf16.msra.mxu0 0
  %215 = vmatprep.subr.bf16.mxu0 0
  %216 = vmatpush2.bf16.msra.mxu0 0
  %217 = vmatprep.subr.bf16.mxu0 0
  %218 = vmatpush2.bf16.msra.mxu0 0
  %219 = vmatprep.subr.bf16.mxu0 0
  %220 = vmatpush2.bf16.msra.mxu0 0
  %221 = vmatprep.subr.bf16.mxu0 0
  %222 = vmatpush2.bf16.msra.mxu0 0
  %223 = vmatprep.subr.bf16.mxu0 0
  %224 = vmatpush2.bf16.msra.mxu0 0
  %225 = vmatprep.mubr.bf16.mxu0 0
  %226 = vmatmul.mubr.bf16.gmra.mxu0 %v191
  %v227 = vpop.f32.mrf.mxu0
  %v228 = vadd.f32 %v163, %v227
  %v229 = vpop.f32.mrf.mxu0
  %v230 = vpop.f32.mrf.mxu0
  %v231 = vadd.f32 %v163, %v230
  %v232 = vpop.f32.mrf.mxu0
  %233 = vdwg.mxu0
  %234 = vst.msk [vmem:[%s6] sm:$0xff] %vm50, %v228
  %235 = vst.msk [vmem:[%s6 + $0x8] sm:$0xff] %vm50, %v231
  // Predicated region
  $region26: #{masked_ffn_forward.1} parent=0 // pred_check
    _
  $region27: #{masked_ffn_forward.1} parent=0 // pred_check_branch
    %237 = sbr.rel (0) target = $region29
  $region28: #{masked_ffn_forward.1} parent=0 // pred_region
    _
  $region29: #{masked_ffn_forward.1} parent=0 // pred_fallthru
    _
  // Predicated region
  $region30: #{masked_ffn_forward.1} parent=0 // pred_check
    _
  $region31: #{masked_ffn_forward.1} parent=0 // pred_check_branch
    %239 = sbr.rel (0) target = $region33
  $region32: #{masked_ffn_forward.1} parent=0 // pred_region
    _
  $region33: #{masked_ffn_forward.1} parent=0 // pred_fallthru
    _

</llo_original>
